<compile_context>
chip_gen: v6e
topology: v6e:2x2x1
jax: 0.10.0
libtpu: 0.0.40
codegen_flags: <defaults>
</compile_context>

<pallas_src>
import functools

import jax
import jax.numpy as jnp
from jax import lax
from jax.experimental import pallas as pl
from jax.experimental.pallas import tpu as pltpu


# ----------------------------------------------------------------------------
# Linear projection kernel: y = x @ w.T + b   (row-tiled, bf16 operands)
# ----------------------------------------------------------------------------

def _linear_kernel(x_ref, w_ref, b_ref, o_ref):
    # x: (TM, Din) bf16, w: (Dout, Din) bf16, b: (1, Dout) f32 -> o: (TM, Dout) f32
    acc = lax.dot_general(
        x_ref[...], w_ref[...],
        dimension_numbers=(((1,), (1,)), ((), ())),   # contract Din with Din == x @ w.T
        preferred_element_type=jnp.float32,
    )
    o_ref[...] = acc + b_ref[...]


def pallas_linear(x, weight, bias, *, tile_m=512):
    """y = x @ weight.T + bias.

    x: (N, Din), weight: (Dout, Din), bias: (Dout,).  Operands are cast to
    bf16 (f32 accumulation); rows are tiled over a 1-D "parallel" grid so the
    BlockSpec pipeline overlaps DMA with compute; the weight block is constant
    across the grid so it stays resident in VMEM.
    """
    n, din = x.shape
    dout = weight.shape[0]

    x_bf = x.astype(jnp.bfloat16)
    w_bf = weight.astype(jnp.bfloat16)
    b2 = bias.astype(jnp.float32).reshape(1, dout)

    block_m = n if n <= tile_m else tile_m
    grid = (pl.cdiv(n, block_m),)

    # Note: for very large Din/Dout a K-reduction grid axis with a f32 VMEM
    # accumulator (pl.when init/finalize) keeps tiles inside the v7x 64 MiB
    # VMEM budget; unnecessary at typical Basisformer d_model.
    return pl.pallas_call(
        _linear_kernel,
        out_shape=jax.ShapeDtypeStruct((n, dout), jnp.float32),
        grid=grid,
        in_specs=[
            pl.BlockSpec((block_m, din), lambda i: (i, 0)),
            pl.BlockSpec((dout, din), lambda i: (0, 0)),   # weight: VMEM-resident
            pl.BlockSpec((1, dout), lambda i: (0, 0)),
        ],
        out_specs=pl.BlockSpec((block_m, dout), lambda i: (i, 0)),
        compiler_params=pltpu.CompilerParams(
            dimension_semantics=("parallel",),
            vmem_limit_bytes=32 * 1024 * 1024,
        ),
    )(x_bf, w_bf, b2)


# ----------------------------------------------------------------------------
# Attention kernel: native (B, L, H*dk) layout, grid over batch, heads in-kernel
# ----------------------------------------------------------------------------

def _attention_kernel(q_ref, k_ref, v_ref, o_ref, attn_ref, *, H, dk, dv, scale):
    # q: (1, L, H*dk), k: (1, S, H*dk), v: (1, S, H*dv)
    # o: (1, L, H*dv)  [lane-dense, head-major],  attn: (1, H, L, S)
    q = q_ref[0].astype(jnp.bfloat16)
    k = k_ref[0].astype(jnp.bfloat16)
    v = v_ref[0].astype(jnp.bfloat16)

    ctxs = []
    attns = []
    for h in range(H):                          # static unrolled head loop
        qh = q[:, h * dk:(h + 1) * dk]          # (L, dk)
        kh = k[:, h * dk:(h + 1) * dk]          # (S, dk)
        vh = v[:, h * dv:(h + 1) * dv]          # (S, dv)

        # QK^T without transposing K: contract last dims directly.
        dots = lax.dot_general(
            qh, kh,
            dimension_numbers=(((1,), (1,)), ((), ())),
            preferred_element_type=jnp.float32,
        ) * scale                               # (L, S) f32

        m = jnp.max(dots, axis=-1, keepdims=True)
        e = jnp.exp(dots - m)
        denom = jnp.sum(e, axis=-1, keepdims=True)
        attn = e * pl.reciprocal(denom, approx=True)   # EUP divide
        attns.append(attn)

        ctxs.append(
            jnp.dot(attn.astype(jnp.bfloat16), vh,
                    preferred_element_type=jnp.float32)  # (L, dv)
        )

    # Single lane-dense store of the (L, H*dv) context and (H, L, S) attention.
    o_ref[0] = jnp.concatenate(ctxs, axis=-1)
    attn_ref[0] = jnp.stack(attns, axis=0)


def pallas_attention(q, k, v, scale, H, dk, dv):
    """q: (B, L, H*dk), k: (B, S, H*dk), v: (B, S, H*dv)
       -> out: (B, L, H*dv), attn: (B, H, L, S)."""
    B, L, _ = q.shape
    S = k.shape[1]
    kernel = functools.partial(_attention_kernel, H=H, dk=dk, dv=dv, scale=scale)
    out, attn = pl.pallas_call(
        kernel,
        out_shape=(
            jax.ShapeDtypeStruct((B, L, H * dv), jnp.float32),
            jax.ShapeDtypeStruct((B, H, L, S), jnp.float32),
        ),
        grid=(B,),
        in_specs=[
            pl.BlockSpec((1, L, H * dk), lambda b: (b, 0, 0)),
            pl.BlockSpec((1, S, H * dk), lambda b: (b, 0, 0)),
            pl.BlockSpec((1, S, H * dv), lambda b: (b, 0, 0)),
        ],
        out_specs=(
            pl.BlockSpec((1, L, H * dv), lambda b: (b, 0, 0)),
            pl.BlockSpec((1, H, L, S), lambda b: (b, 0, 0, 0)),
        ),
        compiler_params=pltpu.CompilerParams(
            dimension_semantics=("parallel",),
            vmem_limit_bytes=32 * 1024 * 1024,
        ),
    )(q, k, v)
    return out, attn


# ----------------------------------------------------------------------------
# Parameters (weight_norm) and module forward — plain JAX glue
# ----------------------------------------------------------------------------

def weight_norm_weight(v, g):
    """PyTorch weight_norm (dim=0): w = g * v / ||v||, norm per output row."""
    norm = jnp.sqrt(jnp.sum(v * v, axis=1, keepdims=True))
    return g.reshape(-1, 1) * v / norm


def init_params(key, d_model, n_heads, d_keys=None, d_values=None):
    d_keys = d_keys or d_model // n_heads
    d_values = d_values or d_model // n_heads
    keys = jax.random.split(key, 12)

    def make_wn_linear(kv, kg, kb, out_dim, in_dim):
        v = jax.random.normal(kv, (out_dim, in_dim), jnp.float32) * 0.1
        g = jax.random.uniform(kg, (out_dim,), jnp.float32, 0.5, 1.5)
        b = jax.random.normal(kb, (out_dim,), jnp.float32) * 0.1
        return {"v": v, "g": g, "b": b}

    return {
        "query": make_wn_linear(keys[0], keys[1], keys[2], d_keys * n_heads, d_model),
        "key": make_wn_linear(keys[3], keys[4], keys[5], d_keys * n_heads, d_model),
        "value": make_wn_linear(keys[6], keys[7], keys[8], d_values * n_heads, d_model),
        "out": make_wn_linear(keys[9], keys[10], keys[11], d_model, d_values * n_heads),
        "n_heads": n_heads,
        "d_keys": d_keys,
        "d_values": d_values,
        "d_model": d_model,
    }


def channel_autocorrelation_forward(params, queries, keys, values):
    """Batched (B, L, d_model) path of channel_AutoCorrelationLayer.forward."""
    H = params["n_heads"]
    dk = params["d_keys"]
    dv = params["d_values"]
    d_model = params["d_model"]
    scale = float(dk) ** (-0.5)

    B, L, _ = queries.shape
    S = keys.shape[1]

    wq = weight_norm_weight(params["query"]["v"], params["query"]["g"])
    wk = weight_norm_weight(params["key"]["v"], params["key"]["g"])
    wv = weight_norm_weight(params["value"]["v"], params["value"]["g"])
    wo = weight_norm_weight(params["out"]["v"], params["out"]["g"])
    bq, bk, bv, bo = (params["query"]["b"], params["key"]["b"],
                      params["value"]["b"], params["out"]["b"])

    q_in = queries.reshape(B * L, d_model)
    k_in = keys.reshape(B * S, d_model)
    v_in = values.reshape(B * S, d_model)

    # Fuse projections that share an input into a single kernel launch.
    if queries is keys and keys is values:
        w = jnp.concatenate([wq, wk, wv], axis=0)
        b = jnp.concatenate([bq, bk, bv], axis=0)
        qkv = pallas_linear(q_in, w, b)
        q = qkv[:, : H * dk]
        k = qkv[:, H * dk: 2 * H * dk]
        v = qkv[:, 2 * H * dk:]
    elif keys is values:   # typical Basisformer call: attn(x, basis, basis)
        q = pallas_linear(q_in, wq, bq)
        w_kv = jnp.concatenate([wk, wv], axis=0)
        b_kv = jnp.concatenate([bk, bv], axis=0)
        kv = pallas_linear(k_in, w_kv, b_kv)
        k = kv[:, : H * dk]
        v = kv[:, H * dk:]
    else:
        q = pallas_linear(q_in, wq, bq)
        k = pallas_linear(k_in, wk, bk)
        v = pallas_linear(v_in, wv, bv)

    # Keep the native head-major lane layout (no (B,L,H,d)->(B,H,L,d) transposes).
    q = q.reshape(B, L, H * dk)
    k = k.reshape(B, S, H * dk)
    v = v.reshape(B, S, H * dv)

    # Attention: grid over batch, all heads in-kernel. dropout(p=0) == identity.
    ctx, attn = pallas_attention(q, k, v, scale, H, dk, dv)  # (B,L,H*dv), (B,H,L,S)

    # Output projection directly on the lane-dense (B*L, H*dv) context.
    out = pallas_linear(ctx.reshape(B * L, H * dv), wo, bo).reshape(B, L, d_model)
    return out, attn


# ----------------------------------------------------------------------------
# Reference (pure JAX / XLA) — mirrors the kernels' mixed precision policy
# (bf16 matmul operands, f32 accumulation) so the comparison isolates kernel
# correctness; the math structure is exactly the PyTorch module's forward.
# ----------------------------------------------------------------------------

def reference_forward(params, queries, keys, values):
    bf16 = jnp.bfloat16
    H = params["n_heads"]
    dk = params["d_keys"]
    dv = params["d_values"]
    d_model = params["d_model"]
    scale = float(dk) ** (-0.5)
    B, L, _ = queries.shape
    S = keys.shape[1]

    wq = weight_norm_weight(params["query"]["v"], params["query"]["g"])
    wk = weight_norm_weight(params["key"]["v"], params["key"]["g"])
    wv = weight_norm_weight(params["value"]["v"], params["value"]["g"])
    wo = weight_norm_weight(params["out"]["v"], params["out"]["g"])

    def linear(x, w, b):
        acc = jnp.dot(x.astype(bf16), w.astype(bf16).T,
                      preferred_element_type=jnp.float32)
        return acc + b

    q = linear(queries.reshape(B * L, d_model), wq, params["query"]["b"])
    k = linear(keys.reshape(B * S, d_model), wk, params["key"]["b"])
    v = linear(values.reshape(B * S, d_model), wv, params["value"]["b"])

    q = q.reshape(B, L, H, dk).transpose(0, 2, 1, 3)
    k = k.reshape(B, S, H, dk).transpose(0, 2, 1, 3)
    v = v.reshape(B, S, H, dv).transpose(0, 2, 1, 3)

    dots = jnp.einsum("bhld,bhsd->bhls", q.astype(bf16), k.astype(bf16),
                      preferred_element_type=jnp.float32) * scale
    attn = jax.nn.softmax(dots, axis=-1)
    ctx = jnp.einsum("bhls,bhsd->bhld", attn.astype(bf16), v.astype(bf16),
                     preferred_element_type=jnp.float32)
    ctx = ctx.transpose(0, 2, 1, 3).reshape(B * L, H * dv)
    out = linear(ctx, params_out := wo, params["out"]["b"]).reshape(B, L, d_model)
    return out, attn


# ----------------------------------------------------------------------------
# Main
# ----------------------------------------------------------------------------

if __name__ == "__main__":
    B, L, S = 2, 8, 8
    d_model, n_heads = 32, 4

    key = jax.random.PRNGKey(0)
    kp, kq, kb = jax.random.split(key, 3)

    params = init_params(kp, d_model, n_heads)
    queries = jax.random.normal(kq, (B, L, d_model), jnp.float32)
    # Basisformer call pattern: keys and values are the same tensor (the basis),
    # which exercises the fused K/V projection path.
    basis = jax.random.normal(kb, (B, S, d_model), jnp.float32)

    out, attn = channel_autocorrelation_forward(params, queries, basis, basis)
    out = jax.block_until_ready(out)
    attn = jax.block_until_ready(attn)

    ref_out, ref_attn = reference_forward(params, queries, basis, basis)

    assert out.shape == (B, L, d_model)
    assert attn.shape == (B, n_heads, L, S)
    assert bool(jnp.all(jnp.isfinite(out))) and bool(jnp.all(jnp.isfinite(attn)))
    # bf16-operand matmuls + EUP approx reciprocal -> loosened tolerances.
    assert jnp.allclose(out, ref_out, atol=2e-2, rtol=2e-2)
    assert jnp.allclose(attn, ref_attn, atol=2e-2, rtol=2e-2)

    print("KERNEL_OK")
</pallas_src>

<mosaic_0001>
module attributes {stable_mosaic.version = 11 : i64} {
  func.func @_linear_kernel(%arg0: i32, %arg1: memref<16x32xbf16, #tpu.memory_space<vmem>>, %arg2: memref<32x32xbf16, #tpu.memory_space<vmem>>, %arg3: memref<1x32xf32, #tpu.memory_space<vmem>>, %arg4: memref<16x32xf32, #tpu.memory_space<vmem>>) attributes {dimension_semantics = [#tpu.dimension_semantics<parallel>], iteration_bounds = array<i64: 1>, scalar_prefetch = 0 : i64, scratch_operands = 0 : i64, tpu.core_type = #tpu.core_type<tc>, window_params = [{transform_indices = @transform_0, window_bounds = array<i64: 16, 32>}, {pipeline_mode = #tpu.pipeline_mode<synchronous>, transform_indices = @transform_1, window_bounds = array<i64: 32, 32>}, {pipeline_mode = #tpu.pipeline_mode<synchronous>, transform_indices = @transform_2, window_bounds = array<i64: 1, 32>}, {transform_indices = @transform_3, window_bounds = array<i64: 16, 32>}]} {
    %c0 = arith.constant 0 : index
    %c0_0 = arith.constant 0 : index
    %0 = vector.load %arg1[%c0, %c0_0] : memref<16x32xbf16, #tpu.memory_space<vmem>>, vector<16x32xbf16>
    %c0_1 = arith.constant 0 : index
    %c0_2 = arith.constant 0 : index
    %1 = vector.load %arg2[%c0_1, %c0_2] : memref<32x32xbf16, #tpu.memory_space<vmem>>, vector<32x32xbf16>
    %cst = arith.constant dense<0.000000e+00> : vector<16x32xf32>
    %2 = tpu.matmul %0, %1, %cst {dimension_numbers = #tpu.dot_dimension_numbers<[1], [1], [0], [0], [0, 0, 1, 0], [], []>} : vector<16x32xbf16>, vector<32x32xbf16>, vector<16x32xf32> -> vector<16x32xf32>
    %c0_3 = arith.constant 0 : index
    %c0_4 = arith.constant 0 : index
    %3 = vector.load %arg3[%c0_3, %c0_4] : memref<1x32xf32, #tpu.memory_space<vmem>>, vector<1x32xf32>
    %4 = vector.broadcast %3 : vector<1x32xf32> to vector<16x32xf32>
    %5 = arith.addf %2, %4 : vector<16x32xf32>
    %c0_5 = arith.constant 0 : index
    %c0_6 = arith.constant 0 : index
    %6 = vector.load %arg4[%c0_5, %c0_6] : memref<16x32xf32, #tpu.memory_space<vmem>>, vector<16x32xf32>
    tpu.vector_store %arg4[%c0_5, %c0_6], %5 {strides = array<i32>} : memref<16x32xf32, #tpu.memory_space<vmem>>, vector<16x32xf32>,
    return
  }
  func.func @transform_0(%arg0: i32) -> (i32, i32) {
    %c0_i32 = arith.constant 0 : i32
    %c0_i32_0 = arith.constant 0 : i32
    return %arg0, %c0_i32 : i32, i32
  }
  func.func @transform_1(%arg0: i32) -> (i32, i32) {
    %c0_i32 = arith.constant 0 : i32
    %c0_i32_0 = arith.constant 0 : i32
    %c0_i32_1 = arith.constant 0 : i32
    return %c0_i32, %c0_i32_0 : i32, i32
  }
  func.func @transform_2(%arg0: i32) -> (i32, i32) {
    %c0_i32 = arith.constant 0 : i32
    %c0_i32_0 = arith.constant 0 : i32
    %c0_i32_1 = arith.constant 0 : i32
    return %c0_i32, %c0_i32_0 : i32, i32
  }
  func.func @transform_3(%arg0: i32) -> (i32, i32) {
    %c0_i32 = arith.constant 0 : i32
    %c0_i32_0 = arith.constant 0 : i32
    return %arg0, %c0_i32 : i32, i32
  }
}

</mosaic_0001>

<llo_original>
// kernel: tpu_custom_call.1
$region0: #{tpu_custom_call.1}
  #allocation0 [shape = 'u32[]', space=smem, size = 0x4, offset = 0x4, fixed_abs, tag = 'smem constant byte address 0x4 - core index']
  #allocation1 [shape = 'u32[144,128]{1,0:T(1,128)}', space=vmem, size = 0x12000, scoped, tag = 'internal scratch']
  %s0 = inlined_call_operand.hbm [shape: bf16[16,32], index: 0, kind: input, shape index: {}]
  %s1 = inlined_call_operand.hbm [shape: bf16[32,32], index: 1, kind: input, shape index: {}]
  %s2 = inlined_call_operand.vmem [shape: f32[1,32], index: 2, kind: input, shape index: {}]
  %s3 = inlined_call_operand.hbm [shape: f32[16,32], index: 3, kind: output, shape index: {}]
  %s4 = sld [smem:[#allocation0]]
  $region30: #{tpu_custom_call.1} parent=0
    _
  %s6 = ssub.s32 1, %s4
  %s7 = scalar_select 0, %s6, %s4
  $region1: #{tpu_custom_call.1} parent=0
    #allocation2 [shape = 'u8[4096]{0}', space=vmem, size = 0x1000, scoped, tag = 'input window, operand 0, single buffered']
    #allocation3 [shape = 's32[1]{0}', space=sflag, size = 0x4, scoped, tag = 'scoped memory for tpu_custom_call.1']
    #allocation4 [shape = 's32[1]{0}', space=sflag, size = 0x4, scoped, tag = 'scoped memory for tpu_custom_call.1']
    #allocation5 [shape = 'u8[8192]{0}', space=vmem, size = 0x2000, scoped, tag = 'input window, operand 1, single buffered']
    #allocation6 [shape = 's32[1]{0}', space=sflag, size = 0x4, scoped, tag = 'scoped memory for tpu_custom_call.1']
    #allocation7 [shape = 'u8[8192]{0}', space=vmem, size = 0x2000, scoped, tag = 'output window, operand 0, single buffered']
    %8 = vsyncpa [#allocation3], 0
    %9 = vsyncpa [#allocation6], 0
    %10 = vsyncpa [#allocation4], 0
    // Predicated region
    $region2: #{tpu_custom_call.1} parent=1 // pred_check
      _
    $region3: #{tpu_custom_call.1} parent=1 // pred_check_branch
      %12 = sbr.rel (0) target = $region5
    $region4: #{tpu_custom_call.1} parent=1 // pred_region
      %s14 = ssub.s32 128, 128
      %15 = vsyncadd [#allocation3], %s14
      %s16 = sshll.u32 [#allocation2], 4
      %s17 = int_to_ptr.vmem [resolvable:$true] %s16
      %22 = dma.hbm_to_vmem [thread:$0]  %s0, 128, %s17, [#allocation3], 64, 64, 4
    $region5: #{tpu_custom_call.1} parent=1 // pred_fallthru
      _
    // Predicated region
    $region6: #{tpu_custom_call.1} parent=1 // pred_check
      _
    $region7: #{tpu_custom_call.1} parent=1 // pred_check_branch
      %24 = sbr.rel (0) target = $region9
    $region8: #{tpu_custom_call.1} parent=1 // pred_region
      %s26 = ssub.s32 256, 256
      %27 = vsyncadd [#allocation6], %s26
      %s28 = sshll.u32 [#allocation5], 4
      %s29 = int_to_ptr.vmem [resolvable:$true] %s28
      %34 = dma.hbm_to_vmem [thread:$0]  %s1, 256, %s29, [#allocation6], 64, 64, 4
    $region9: #{tpu_custom_call.1} parent=1 // pred_fallthru
      _
    // Predicated region
    $region10: #{tpu_custom_call.1} parent=1 // pred_check
      _
    $region11: #{tpu_custom_call.1} parent=1 // pred_check_branch
      %36 = sbr.rel (0) target = $region13
    $region12: #{tpu_custom_call.1} parent=1 // pred_region
      _
    $region13: #{tpu_custom_call.1} parent=1 // pred_fallthru
      _
    // Predicated region
    $region14: #{tpu_custom_call.1} parent=1 // pred_check
      _
    $region15: #{tpu_custom_call.1} parent=1 // pred_check_branch
      %38 = sbr.rel (0) target = $region17
    $region16: #{tpu_custom_call.1} parent=1 // pred_region
      %39 = dma.done [#allocation3], 128
    $region17: #{tpu_custom_call.1} parent=1 // pred_fallthru
      _
    // Predicated region
    $region18: #{tpu_custom_call.1} parent=1 // pred_check
      _
    $region19: #{tpu_custom_call.1} parent=1 // pred_check_branch
      %41 = sbr.rel (0) target = $region21
    $region20: #{tpu_custom_call.1} parent=1 // pred_region
      %42 = dma.done [#allocation6], 256
    $region21: #{tpu_custom_call.1} parent=1 // pred_fallthru
      _
    %v44 = vld [vmem:[#allocation2] sm:$0xf]
    %v45 = vld [vmem:[#allocation2 + $0x4] sm:$0xf]
    %v46 = vld [vmem:[#allocation5] sm:$0xf]
    %v47 = vld [vmem:[#allocation5 + $0x4] sm:$0xf]
    %v48 = vld [vmem:[#allocation5 + $0x8] sm:$0xf]
    %v49 = vld [vmem:[#allocation5 + $0xc] sm:$0xf]
    %v50 = vld [vmem:[%s2] sm:$0x1]
    %v52 = vlaneseq
    %v53 = vshrl.u32 %v52, 7
    %v54 = vsub.s32 0, %v53
    %v55 = vrot.slane %v50, %v54
    %v59 = vunpack.c.l.b16 %v44
    %v60 = vunpack.c.l.b16 %v45
    %v61 = vpack.c.b16 %v60, %v59
    %v66 = vunpack.c.l.b16 %v46
    %v67 = vunpack.c.l.b16 %v47
    %v68 = vunpack.c.l.b16 %v48
    %v69 = vunpack.c.l.b16 %v49
    %v70 = vpack.c.b16 %v67, %v66
    %v71 = vpack.c.b16 %v69, %v68
    %vm72 = vcmask 261120
    %v74 = vsel %vm72, %v61, 0
    %v77 = vsel %vm72, %v70, 0
    %v80 = vsel %vm72, %v71, 0
    %82 = vmatprep.subr.bf16.mxu0 0
    %83 = vmatpush1.bf16.xpose.msra.mxu0 0
    %84 = vmatprep.subr.bf16.mxu0 0
    %85 = vmatpush1.bf16.xpose.msra.mxu0 0
    %86 = vmatprep.subr.bf16.mxu0 0
    %87 = vmatpush1.bf16.xpose.msra.mxu0 0
    %88 = vmatprep.subr.bf16.mxu0 0
    %89 = vmatpush1.bf16.xpose.msra.mxu0 0
    %90 = vmatprep.subr.bf16.mxu0 0
    %91 = vmatpush1.bf16.xpose.msra.mxu0 0
    %92 = vmatprep.subr.bf16.mxu0 0
    %93 = vmatpush1.bf16.xpose.msra.mxu0 0
    %94 = vmatprep.subr.bf16.mxu0 0
    %95 = vmatpush1.bf16.xpose.msra.mxu0 %v80
    %96 = vmatprep.subr.bf16.mxu0 0
    %97 = vmatpush1.bf16.xpose.msra.mxu0 %v77
    %98 = vmatprep.subr.bf16.mxu0 0
    %99 = vmatpush2.bf16.xpose.msra.mxu0 0
    %100 = vmatprep.subr.bf16.mxu0 0
    %101 = vmatpush2.bf16.xpose.msra.mxu0 0
    %102 = vmatprep.subr.bf16.mxu0 0
    %103 = vmatpush2.bf16.xpose.msra.mxu0 0
    %104 = vmatprep.subr.bf16.mxu0 0
    %105 = vmatpush2.bf16.xpose.msra.mxu0 0
    %106 = vmatprep.subr.bf16.mxu0 0
    %107 = vmatpush2.bf16.xpose.msra.mxu0 0
    %108 = vmatprep.subr.bf16.mxu0 0
    %109 = vmatpush2.bf16.xpose.msra.mxu0 0
    %110 = vmatprep.subr.bf16.mxu0 0
    %111 = vmatpush2.bf16.xpose.msra.mxu0 0
    %112 = vmatprep.subr.bf16.mxu0 0
    %113 = vmatpush2.bf16.xpose.msra.mxu0 0
    %114 = vmatprep.mubr.bf16.mxu0 0
    %115 = vmatmul.mubr.bf16.gmra.mxu0 %v74
    %v116 = vpop.f32.mrf.mxu0
    %v117 = vadd.f32 %v55, %v116
    %v118 = vpop.f32.mrf.mxu0
    %v119 = vpop.f32.mrf.mxu0
    %v120 = vadd.f32 %v55, %v119
    %v121 = vpop.f32.mrf.mxu0
    %122 = vdwg.mxu0
    %123 = vst.msk [vmem:[#allocation7] sm:$0xff] %vm72, %v117
    %124 = vst.msk [vmem:[#allocation7 + $0x8] sm:$0xff] %vm72, %v120
    // Predicated region
    $region22: #{tpu_custom_call.1} parent=1 // pred_check
      _
    $region23: #{tpu_custom_call.1} parent=1 // pred_check_branch
      %126 = sbr.rel (0) target = $region25
    $region24: #{tpu_custom_call.1} parent=1 // pred_region
      %s128 = ssub.s32 256, 256
      %129 = vsyncadd [#allocation4], %s128
      %s130 = sshll.u32 [#allocation7], 4
      %s131 = int_to_ptr.vmem [resolvable:$true] %s130
      %136 = dma.vmem_to_hbm [thread:$0]  %s131, 256, %s3, [#allocation4], 128, 128, 8
    $region25: #{tpu_custom_call.1} parent=1 // pred_fallthru
      _
    // Predicated region
    $region26: #{tpu_custom_call.1} parent=1 // pred_check
      _
    $region27: #{tpu_custom_call.1} parent=1 // pred_check_branch
      %138 = sbr.rel (0) target = $region29
    $region28: #{tpu_custom_call.1} parent=1 // pred_region
      %139 = dma.done [#allocation4], 256
    $region29: #{tpu_custom_call.1} parent=1 // pred_fallthru
      _
    %140 = vsyncpa [#allocation3], 1
    %141 = vsyncpa [#allocation6], 1
    %142 = vsyncpa [#allocation4], 1

</llo_original>
